<compile_context>
chip_gen: v7x
topology: tpu7x:2x2x1
jax: 0.10.0
libtpu: 0.0.40
codegen_flags: <defaults>
</compile_context>

<pallas_src>
import math

import jax
import jax.numpy as jnp
from jax.experimental import pallas as pl
from jax.experimental.pallas import tpu as pltpu


def _round_up(x, m):
    return ((x + m - 1) // m) * m


def _select_tiling(batch, desired_tile):
    """Pick a lane-aligned (multiple of 128) batch tile and padded batch."""
    desired_tile = max(128, _round_up(desired_tile, 128))
    tile_b = min(desired_tile, _round_up(batch, 128))
    padded = _round_up(batch, tile_b)
    # Prefer >=2 grid steps when the batch allows it (v7x megacore + keeps the
    # input/output DMA double-buffer actually overlapping with compute).
    if padded // tile_b == 1 and padded >= 256:
        tile_b = _round_up(padded // 2, 128)
        padded = _round_up(batch, tile_b)
    return tile_b, padded


def softq_kernel(x_ref, w1_ref, b1_ref, w2_ref, b2_ref, w4_ref, b4_ref,
                 w3_ref, b3_ref, o_ref):
    """Fused 4-layer MLP on one batch tile, feature-major layout.

    x_ref: (in_dim, tile_b)   w*: PyTorch (out, in) layout   b*: (out, 1)
    o_ref: (1, tile_b)        -> lane-dense Q row for this tile.
    """
    cdt = w1_ref.dtype                       # bf16 for large hidden, else f32
    x = x_ref[...].astype(cdt)               # (in_dim, tile_b)

    h = jnp.dot(w1_ref[...], x,
                preferred_element_type=jnp.float32) + b1_ref[...]
    h = jnp.maximum(h, 0.0)

    h = jnp.dot(w2_ref[...], h.astype(cdt),
                preferred_element_type=jnp.float32) + b2_ref[...]
    h = jnp.maximum(h, 0.0)

    h = jnp.dot(w4_ref[...], h.astype(cdt),
                preferred_element_type=jnp.float32) + b4_ref[...]
    h = jnp.maximum(h, 0.0)

    # Final (1, hidden) @ (hidden, tile_b) projection in f32 -> (1, tile_b).
    o_ref[...] = (jnp.dot(w3_ref[...], h,
                          preferred_element_type=jnp.float32) + b3_ref[...])


def softq_forward(state, action, params, *, tile_b=512, compute_dtype=None):
    """Batch-tiled fused Pallas forward.

    state:  (B, state_dim)  float32
    action: (B, action_dim) float32
    params: PyTorch-layout weights (out, in), biases (out, 1); w3 (1, hidden),
            b3 (1, 1).
    Returns (B, 1) float32 Q-values.
    """
    state = jnp.asarray(state, jnp.float32)
    action = jnp.asarray(action, jnp.float32)
    B = state.shape[0]
    in_dim = state.shape[1] + action.shape[1]
    hidden = params["w2"].shape[0]

    if compute_dtype is None:
        # bf16 matmul operands only pay off (and stay accurate enough) at
        # realistic hidden sizes; tiny nets stay f32.
        compute_dtype = jnp.bfloat16 if hidden >= 256 else jnp.float32

    tile_b, Bp = _select_tiling(B, tile_b)
    grid = (Bp // tile_b,)

    # One concat + transpose (tiny, one-time XLA op): x_t is (in_dim, Bp).
    x_t = jnp.concatenate([state, action], axis=1).T
    if Bp != B:
        x_t = jnp.pad(x_t, ((0, 0), (0, Bp - B)))

    w1 = params["w1"].astype(compute_dtype)
    w2 = params["w2"].astype(compute_dtype)
    w4 = params["w4"].astype(compute_dtype)
    b1, b2, b4 = params["b1"], params["b2"], params["b4"]
    w3, b3 = params["w3"], params["b3"]            # kept f32 (correctness)

    batch_map = lambda i: (0, i)                   # batch rides the lane axis
    const_map = lambda i: (0, 0)                   # VMEM-resident weights

    in_specs = [
        pl.BlockSpec((in_dim, tile_b), batch_map),   # x^T tile
        pl.BlockSpec((hidden, in_dim), const_map),   # w1
        pl.BlockSpec((hidden, 1), const_map),        # b1
        pl.BlockSpec((hidden, hidden), const_map),   # w2
        pl.BlockSpec((hidden, 1), const_map),        # b2
        pl.BlockSpec((hidden, hidden), const_map),   # w4
        pl.BlockSpec((hidden, 1), const_map),        # b4
        pl.BlockSpec((1, hidden), const_map),        # w3 (row)
        pl.BlockSpec((1, 1), const_map),             # b3
    ]
    out_specs = pl.BlockSpec((1, tile_b), batch_map)  # lane-dense Q row

    # Scheduler hint + explicit VMEM budget (v5e default scoped limit: 16 MiB).
    wsize = jnp.dtype(compute_dtype).itemsize
    weight_bytes = ((hidden * in_dim + 2 * hidden * hidden) * wsize
                    + (3 * hidden + hidden + 1) * 4)
    flops = 2 * Bp * (in_dim * hidden + 2 * hidden * hidden + hidden)
    bytes_accessed = Bp * in_dim * 4 + weight_bytes + Bp * 4
    cost = pl.CostEstimate(flops=flops, transcendentals=0,
                           bytes_accessed=bytes_accessed)

    act_bytes = 4 * hidden * tile_b * 4                 # live f32 activations
    io_bytes = 2 * (in_dim * tile_b * 4 + tile_b * 4)   # double-buffered I/O
    vmem_limit = int(min(max(2 * weight_bytes + act_bytes + io_bytes
                             + (8 << 20), 32 << 20), 64 << 20))

    out = pl.pallas_call(
        softq_kernel,
        out_shape=jax.ShapeDtypeStruct((1, Bp), jnp.float32),
        grid=grid,
        in_specs=in_specs,
        out_specs=out_specs,
        compiler_params=pltpu.CompilerParams(
            dimension_semantics=("parallel",),
            vmem_limit_bytes=vmem_limit),
        cost_estimate=cost,
    )(x_t, w1, b1, w2, b2, w4, b4, w3, b3)

    return out[0, :B].reshape(B, 1)


def init_params(key, state_dim, action_dim, hidden_dim, init_w=0.003):
    """Deterministic init mirroring the PyTorch module, PyTorch weight layout.

    nn.Linear default: U(-1/sqrt(fan_in), 1/sqrt(fan_in)) for weight & bias.
    linear3 is overridden with U(-init_w, init_w).
    Weights stored as (out, in); biases as (out, 1) columns.
    """
    ks = jax.random.split(key, 8)
    in_dim = state_dim + action_dim

    def linear_init(kw, kb, fan_in, fan_out):
        bound = 1.0 / math.sqrt(fan_in)
        w = jax.random.uniform(kw, (fan_out, fan_in), jnp.float32,
                               minval=-bound, maxval=bound)
        b = jax.random.uniform(kb, (fan_out, 1), jnp.float32,
                               minval=-bound, maxval=bound)
        return w, b

    w1, b1 = linear_init(ks[0], ks[1], in_dim, hidden_dim)
    w2, b2 = linear_init(ks[2], ks[3], hidden_dim, hidden_dim)
    w4, b4 = linear_init(ks[4], ks[5], hidden_dim, hidden_dim)
    w3 = jax.random.uniform(ks[6], (1, hidden_dim), jnp.float32,
                            minval=-init_w, maxval=init_w)
    b3 = jax.random.uniform(ks[7], (1, 1), jnp.float32,
                            minval=-init_w, maxval=init_w)
    return {"w1": w1, "b1": b1, "w2": w2, "b2": b2,
            "w4": w4, "b4": b4, "w3": w3, "b3": b3}


def _mm(a, b):
    return jnp.matmul(a, b, precision=jax.lax.Precision.HIGHEST)


def softq_ref(state, action, p):
    """Pure-JAX (f32, highest precision) reference matching PyTorch forward."""
    x = jnp.concatenate([state, action], axis=1)
    h = jax.nn.relu(_mm(x, p["w1"].T) + p["b1"].T)
    h = jax.nn.relu(_mm(h, p["w2"].T) + p["b2"].T)
    h = jax.nn.relu(_mm(h, p["w4"].T) + p["b4"].T)
    return _mm(h, p["w3"].T) + p["b3"]


if __name__ == "__main__":
    key = jax.random.PRNGKey(0)
    kp1, ks1, ka1, kp2, ks2, ka2 = jax.random.split(key, 6)

    # Case 1: tiny SAC shapes, f32 path (hidden < 256), single grid step.
    B1, SD, AD, H1 = 16, 12, 4, 32
    params1 = init_params(kp1, SD, AD, H1, init_w=0.003)
    s1 = jax.random.normal(ks1, (B1, SD), jnp.float32)
    a1 = jax.random.normal(ka1, (B1, AD), jnp.float32)

    out1 = jax.block_until_ready(softq_forward(s1, a1, params1))
    ref1 = softq_ref(s1, a1, params1)
    assert out1.shape == (B1, 1), out1.shape
    assert jnp.allclose(out1, ref1, atol=1e-5, rtol=1e-5), \
        f"f32 mismatch: max abs err {jnp.max(jnp.abs(out1 - ref1))}"

    # Case 2: hidden=256 -> bf16-weight path, B=300 -> padded batch, grid=(2,)
    # (exercises multi-step pipelining + megacore-parallel batch axis).
    B2, H2 = 300, 256
    params2 = init_params(kp2, SD, AD, H2, init_w=0.003)
    s2 = jax.random.normal(ks2, (B2, SD), jnp.float32)
    a2 = jax.random.normal(ka2, (B2, AD), jnp.float32)

    out2 = jax.block_until_ready(softq_forward(s2, a2, params2))
    ref2 = softq_ref(s2, a2, params2)
    assert out2.shape == (B2, 1), out2.shape
    assert jnp.allclose(out2, ref2, atol=1e-2, rtol=1e-2), \
        f"bf16 mismatch: max abs err {jnp.max(jnp.abs(out2 - ref2))}"

    print("KERNEL_OK")
</pallas_src>

<mosaic_0001>
module attributes {stable_mosaic.version = 11 : i64} {
  func.func @softq_kernel(%arg0: i32, %arg1: memref<16x128xf32, #tpu.memory_space<vmem>>, %arg2: memref<32x16xf32, #tpu.memory_space<vmem>>, %arg3: memref<32x1xf32, #tpu.memory_space<vmem>>, %arg4: memref<32x32xf32, #tpu.memory_space<vmem>>, %arg5: memref<32x1xf32, #tpu.memory_space<vmem>>, %arg6: memref<32x32xf32, #tpu.memory_space<vmem>>, %arg7: memref<32x1xf32, #tpu.memory_space<vmem>>, %arg8: memref<1x32xf32, #tpu.memory_space<vmem>>, %arg9: memref<1x1xf32, #tpu.memory_space<vmem>>, %arg10: memref<1x128xf32, #tpu.memory_space<vmem>>) attributes {dimension_semantics = [#tpu.dimension_semantics<parallel>], iteration_bounds = array<i64: 1>, scalar_prefetch = 0 : i64, scratch_operands = 0 : i64, tpu.core_type = #tpu.core_type<tc>, window_params = [{transform_indices = @transform_0, window_bounds = array<i64: 16, 128>}, {pipeline_mode = #tpu.pipeline_mode<synchronous>, transform_indices = @transform_1, window_bounds = array<i64: 32, 16>}, {pipeline_mode = #tpu.pipeline_mode<synchronous>, transform_indices = @transform_2, window_bounds = array<i64: 32, 1>}, {pipeline_mode = #tpu.pipeline_mode<synchronous>, transform_indices = @transform_3, window_bounds = array<i64: 32, 32>}, {pipeline_mode = #tpu.pipeline_mode<synchronous>, transform_indices = @transform_4, window_bounds = array<i64: 32, 1>}, {pipeline_mode = #tpu.pipeline_mode<synchronous>, transform_indices = @transform_5, window_bounds = array<i64: 32, 32>}, {pipeline_mode = #tpu.pipeline_mode<synchronous>, transform_indices = @transform_6, window_bounds = array<i64: 32, 1>}, {pipeline_mode = #tpu.pipeline_mode<synchronous>, transform_indices = @transform_7, window_bounds = array<i64: 1, 32>}, {pipeline_mode = #tpu.pipeline_mode<synchronous>, transform_indices = @transform_8, window_bounds = array<i64: 1, 1>}, {transform_indices = @transform_9, window_bounds = array<i64: 1, 128>}]} {
    %c0 = arith.constant 0 : index
    %c0_0 = arith.constant 0 : index
    %0 = vector.load %arg1[%c0, %c0_0] : memref<16x128xf32, #tpu.memory_space<vmem>>, vector<16x128xf32>
    %c0_1 = arith.constant 0 : index
    %c0_2 = arith.constant 0 : index
    %1 = vector.load %arg2[%c0_1, %c0_2] : memref<32x16xf32, #tpu.memory_space<vmem>>, vector<32x16xf32>
    %cst = arith.constant dense<0.000000e+00> : vector<32x128xf32>
    %2 = tpu.matmul %1, %0, %cst {dimension_numbers = #tpu.dot_dimension_numbers<[1], [0], [0], [1], [0, 0, 1, 1], [], []>} : vector<32x16xf32>, vector<16x128xf32>, vector<32x128xf32> -> vector<32x128xf32>
    %c0_3 = arith.constant 0 : index
    %c0_4 = arith.constant 0 : index
    %3 = vector.load %arg3[%c0_3, %c0_4] : memref<32x1xf32, #tpu.memory_space<vmem>>, vector<32x1xf32>
    %4 = vector.broadcast %3 : vector<32x1xf32> to vector<32x128xf32>
    %5 = arith.addf %2, %4 : vector<32x128xf32>
    %cst_5 = arith.constant 0.000000e+00 : f32
    %6 = vector.broadcast %cst_5 : f32 to vector<32x128xf32>
    %7 = arith.maximumf %5, %6 : vector<32x128xf32>
    %c0_6 = arith.constant 0 : index
    %c0_7 = arith.constant 0 : index
    %8 = vector.load %arg4[%c0_6, %c0_7] : memref<32x32xf32, #tpu.memory_space<vmem>>, vector<32x32xf32>
    %cst_8 = arith.constant dense<0.000000e+00> : vector<32x128xf32>
    %9 = tpu.matmul %8, %7, %cst_8 {dimension_numbers = #tpu.dot_dimension_numbers<[1], [0], [0], [1], [0, 0, 1, 1], [], []>} : vector<32x32xf32>, vector<32x128xf32>, vector<32x128xf32> -> vector<32x128xf32>
    %c0_9 = arith.constant 0 : index
    %c0_10 = arith.constant 0 : index
    %10 = vector.load %arg5[%c0_9, %c0_10] : memref<32x1xf32, #tpu.memory_space<vmem>>, vector<32x1xf32>
    %11 = vector.broadcast %10 : vector<32x1xf32> to vector<32x128xf32>
    %12 = arith.addf %9, %11 : vector<32x128xf32>
    %cst_11 = arith.constant 0.000000e+00 : f32
    %13 = vector.broadcast %cst_11 : f32 to vector<32x128xf32>
    %14 = arith.maximumf %12, %13 : vector<32x128xf32>
    %c0_12 = arith.constant 0 : index
    %c0_13 = arith.constant 0 : index
    %15 = vector.load %arg6[%c0_12, %c0_13] : memref<32x32xf32, #tpu.memory_space<vmem>>, vector<32x32xf32>
    %cst_14 = arith.constant dense<0.000000e+00> : vector<32x128xf32>
    %16 = tpu.matmul %15, %14, %cst_14 {dimension_numbers = #tpu.dot_dimension_numbers<[1], [0], [0], [1], [0, 0, 1, 1], [], []>} : vector<32x32xf32>, vector<32x128xf32>, vector<32x128xf32> -> vector<32x128xf32>
    %c0_15 = arith.constant 0 : index
    %c0_16 = arith.constant 0 : index
    %17 = vector.load %arg7[%c0_15, %c0_16] : memref<32x1xf32, #tpu.memory_space<vmem>>, vector<32x1xf32>
    %18 = vector.broadcast %17 : vector<32x1xf32> to vector<32x128xf32>
    %19 = arith.addf %16, %18 : vector<32x128xf32>
    %cst_17 = arith.constant 0.000000e+00 : f32
    %20 = vector.broadcast %cst_17 : f32 to vector<32x128xf32>
    %21 = arith.maximumf %19, %20 : vector<32x128xf32>
    %c0_18 = arith.constant 0 : index
    %c0_19 = arith.constant 0 : index
    %22 = vector.load %arg8[%c0_18, %c0_19] : memref<1x32xf32, #tpu.memory_space<vmem>>, vector<1x32xf32>
    %cst_20 = arith.constant dense<0.000000e+00> : vector<1x128xf32>
    %23 = tpu.matmul %22, %21, %cst_20 {dimension_numbers = #tpu.dot_dimension_numbers<[1], [0], [0], [1], [0, 0, 1, 1], [], []>} : vector<1x32xf32>, vector<32x128xf32>, vector<1x128xf32> -> vector<1x128xf32>
    %c0_21 = arith.constant 0 : index
    %c0_22 = arith.constant 0 : index
    %24 = vector.load %arg9[%c0_21, %c0_22] : memref<1x1xf32, #tpu.memory_space<vmem>>, vector<1x1xf32>
    %25 = vector.broadcast %24 : vector<1x1xf32> to vector<1x128xf32>
    %26 = arith.addf %23, %25 : vector<1x128xf32>
    %c0_23 = arith.constant 0 : index
    %c0_24 = arith.constant 0 : index
    %27 = vector.load %arg10[%c0_23, %c0_24] : memref<1x128xf32, #tpu.memory_space<vmem>>, vector<1x128xf32>
    tpu.vector_store %arg10[%c0_23, %c0_24], %26 {strides = array<i32>} : memref<1x128xf32, #tpu.memory_space<vmem>>, vector<1x128xf32>,
    return
  }
  func.func @transform_0(%arg0: i32) -> (i32, i32) {
    %c0_i32 = arith.constant 0 : i32
    %c0_i32_0 = arith.constant 0 : i32
    return %c0_i32, %arg0 : i32, i32
  }
  func.func @transform_1(%arg0: i32) -> (i32, i32) {
    %c0_i32 = arith.constant 0 : i32
    %c0_i32_0 = arith.constant 0 : i32
    %c0_i32_1 = arith.constant 0 : i32
    return %c0_i32, %c0_i32_0 : i32, i32
  }
  func.func @transform_2(%arg0: i32) -> (i32, i32) {
    %c0_i32 = arith.constant 0 : i32
    %c0_i32_0 = arith.constant 0 : i32
    %c0_i32_1 = arith.constant 0 : i32
    return %c0_i32, %c0_i32_0 : i32, i32
  }
  func.func @transform_3(%arg0: i32) -> (i32, i32) {
    %c0_i32 = arith.constant 0 : i32
    %c0_i32_0 = arith.constant 0 : i32
    %c0_i32_1 = arith.constant 0 : i32
    return %c0_i32, %c0_i32_0 : i32, i32
  }
  func.func @transform_4(%arg0: i32) -> (i32, i32) {
    %c0_i32 = arith.constant 0 : i32
    %c0_i32_0 = arith.constant 0 : i32
    %c0_i32_1 = arith.constant 0 : i32
    return %c0_i32, %c0_i32_0 : i32, i32
  }
  func.func @transform_5(%arg0: i32) -> (i32, i32) {
    %c0_i32 = arith.constant 0 : i32
    %c0_i32_0 = arith.constant 0 : i32
    %c0_i32_1 = arith.constant 0 : i32
    return %c0_i32, %c0_i32_0 : i32, i32
  }
  func.func @transform_6(%arg0: i32) -> (i32, i32) {
    %c0_i32 = arith.constant 0 : i32
    %c0_i32_0 = arith.constant 0 : i32
    %c0_i32_1 = arith.constant 0 : i32
    return %c0_i32, %c0_i32_0 : i32, i32
  }
  func.func @transform_7(%arg0: i32) -> (i32, i32) {
    %c0_i32 = arith.constant 0 : i32
    %c0_i32_0 = arith.constant 0 : i32
    %c0_i32_1 = arith.constant 0 : i32
    return %c0_i32, %c0_i32_0 : i32, i32
  }
  func.func @transform_8(%arg0: i32) -> (i32, i32) {
    %c0_i32 = arith.constant 0 : i32
    %c0_i32_0 = arith.constant 0 : i32
    %c0_i32_1 = arith.constant 0 : i32
    return %c0_i32, %c0_i32_0 : i32, i32
  }
  func.func @transform_9(%arg0: i32) -> (i32, i32) {
    %c0_i32 = arith.constant 0 : i32
    %c0_i32_0 = arith.constant 0 : i32
    return %c0_i32, %arg0 : i32, i32
  }
}

</mosaic_0001>

<llo_original>
// kernel: tpu_custom_call.1
$region0: #{tpu_custom_call.1}
  #allocation0 [shape = 'u32[]', space=smem, size = 0x4, offset = 0x4, fixed_abs, tag = 'smem constant byte address 0x4 - core index']
  #allocation1 [shape = 'u32[144,128]{1,0:T(1,128)}', space=vmem, size = 0x12000, scoped, tag = 'internal scratch']
  #allocation2 [shape = 'f32[1,1]{1,0:T(1,128)S(1)}', space=vmem, size = 0x200, scoped, tag = 'scoped memory for tpu_custom_call.1']
  %s0 = inlined_call_operand.vmem [shape: f32[16,128], index: 0, kind: input, shape index: {}]
  %s1 = inlined_call_operand.vmem [shape: f32[32,16], index: 1, kind: input, shape index: {}]
  %s2 = inlined_call_operand.vmem [shape: f32[32,1], index: 2, kind: input, shape index: {}]
  %s3 = inlined_call_operand.vmem [shape: f32[32,32], index: 3, kind: input, shape index: {}]
  %s4 = inlined_call_operand.vmem [shape: f32[32,1], index: 4, kind: input, shape index: {}]
  %s5 = inlined_call_operand.vmem [shape: f32[32,32], index: 5, kind: input, shape index: {}]
  %s6 = inlined_call_operand.vmem [shape: f32[32,1], index: 6, kind: input, shape index: {}]
  %s7 = inlined_call_operand.vmem [shape: f32[1,32], index: 7, kind: input, shape index: {}]
  %s8 = inlined_call_operand.<no memory space> [shape: f32[1,1], index: 8, kind: input, shape index: {}]
  %s9 = inlined_call_operand.hbm [shape: f32[1,128], index: 9, kind: output, shape index: {}]
  %s10 = sld [smem:[#allocation0]]
  $region46: #{tpu_custom_call.1} parent=0
    _
  %s12 = ssub.s32 1, %s10
  %s13 = scalar_select 0, %s12, %s10
  %v14 = vstv %s8
  %15 = vst [vmem:[#allocation2] sm:$0x1] %v14
  $region1: #{tpu_custom_call.1} parent=0
    #allocation3 [shape = 'u8[512]{0}', space=vmem, size = 0x400, scoped, tag = 'output window, operand 0, single buffered']
    #allocation4 [shape = 's32[1]{0}', space=sflag, size = 0x4, scoped, tag = 'scoped memory for tpu_custom_call.1']
    %16 = vsyncpa [#allocation4], 0
    // Predicated region
    $region2: #{tpu_custom_call.1} parent=1 // pred_check
      _
    $region3: #{tpu_custom_call.1} parent=1 // pred_check_branch
      %18 = sbr.rel (0) target = $region5
    $region4: #{tpu_custom_call.1} parent=1 // pred_region
      _
    $region5: #{tpu_custom_call.1} parent=1 // pred_fallthru
      _
    // Predicated region
    $region6: #{tpu_custom_call.1} parent=1 // pred_check
      _
    $region7: #{tpu_custom_call.1} parent=1 // pred_check_branch
      %20 = sbr.rel (0) target = $region9
    $region8: #{tpu_custom_call.1} parent=1 // pred_region
      _
    $region9: #{tpu_custom_call.1} parent=1 // pred_fallthru
      _
    // Predicated region
    $region10: #{tpu_custom_call.1} parent=1 // pred_check
      _
    $region11: #{tpu_custom_call.1} parent=1 // pred_check_branch
      %22 = sbr.rel (0) target = $region13
    $region12: #{tpu_custom_call.1} parent=1 // pred_region
      _
    $region13: #{tpu_custom_call.1} parent=1 // pred_fallthru
      _
    // Predicated region
    $region14: #{tpu_custom_call.1} parent=1 // pred_check
      _
    $region15: #{tpu_custom_call.1} parent=1 // pred_check_branch
      %24 = sbr.rel (0) target = $region17
    $region16: #{tpu_custom_call.1} parent=1 // pred_region
      _
    $region17: #{tpu_custom_call.1} parent=1 // pred_fallthru
      _
    // Predicated region
    $region18: #{tpu_custom_call.1} parent=1 // pred_check
      _
    $region19: #{tpu_custom_call.1} parent=1 // pred_check_branch
      %26 = sbr.rel (0) target = $region21
    $region20: #{tpu_custom_call.1} parent=1 // pred_region
      _
    $region21: #{tpu_custom_call.1} parent=1 // pred_fallthru
      _
    // Predicated region
    $region22: #{tpu_custom_call.1} parent=1 // pred_check
      _
    $region23: #{tpu_custom_call.1} parent=1 // pred_check_branch
      %28 = sbr.rel (0) target = $region25
    $region24: #{tpu_custom_call.1} parent=1 // pred_region
      _
    $region25: #{tpu_custom_call.1} parent=1 // pred_fallthru
      _
    // Predicated region
    $region26: #{tpu_custom_call.1} parent=1 // pred_check
      _
    $region27: #{tpu_custom_call.1} parent=1 // pred_check_branch
      %30 = sbr.rel (0) target = $region29
    $region28: #{tpu_custom_call.1} parent=1 // pred_region
      _
    $region29: #{tpu_custom_call.1} parent=1 // pred_fallthru
      _
    // Predicated region
    $region30: #{tpu_custom_call.1} parent=1 // pred_check
      _
    $region31: #{tpu_custom_call.1} parent=1 // pred_check_branch
      %32 = sbr.rel (0) target = $region33
    $region32: #{tpu_custom_call.1} parent=1 // pred_region
      _
    $region33: #{tpu_custom_call.1} parent=1 // pred_fallthru
      _
    // Predicated region
    $region34: #{tpu_custom_call.1} parent=1 // pred_check
      _
    $region35: #{tpu_custom_call.1} parent=1 // pred_check_branch
      %34 = sbr.rel (0) target = $region37
    $region36: #{tpu_custom_call.1} parent=1 // pred_region
      _
    $region37: #{tpu_custom_call.1} parent=1 // pred_fallthru
      _
    %v35 = vld [vmem:[%s0] sm:$0xff]
    %v36 = vld [vmem:[%s0 + $0x8] sm:$0xff]
    %v37 = vld [vmem:[%s1] sm:$0xff]
    %v38 = vld [vmem:[%s1 + $0x8] sm:$0xff]
    %v39 = vld [vmem:[%s1 + $0x10] sm:$0xff]
    %v40 = vld [vmem:[%s1 + $0x18] sm:$0xff]
    %v41 = vld [vmem:[%s2] sm:$0xff]
    %v42 = vld [vmem:[%s2 + $0x8] sm:$0xff]
    %v43 = vld [vmem:[%s2 + $0x10] sm:$0xff]
    %v44 = vld [vmem:[%s2 + $0x18] sm:$0xff]
    %46 = vset.pattern.permute.xlu0 0
    %47 = vperm.xlu0 %46, %v41
    %v48 = vpop.permute.xlu0 %47
    %51 = vset.pattern.permute.xlu0 0
    %52 = vperm.xlu0 %51, %v42
    %v53 = vpop.permute.xlu0 %52
    %56 = vset.pattern.permute.xlu0 0
    %57 = vperm.xlu0 %56, %v43
    %v58 = vpop.permute.xlu0 %57
    %61 = vset.pattern.permute.xlu0 0
    %62 = vperm.xlu0 %61, %v44
    %v63 = vpop.permute.xlu0 %62
    %vm65 = vcmask 130048
    %v67 = vsel %vm65, %v37, 0
    %v70 = vsel %vm65, %v38, 0
    %v73 = vsel %vm65, %v39, 0
    %v76 = vsel %vm65, %v40, 0
    %78 = vmatprep.subr.mxu0 0.0
    %79 = vmatpush1.msra.mxu0 %v35
    %80 = vmatprep.subr.mxu0 0.0
    %81 = vmatpush1.msra.mxu0 %v36
    %82 = vmatprep.subr.mxu0 0.0
    %83 = vmatpush1.msra.mxu0 0.0
    %84 = vmatprep.subr.mxu0 0.0
    %85 = vmatpush1.msra.mxu0 0.0
    %86 = vmatprep.subr.mxu0 0.0
    %87 = vmatpush1.msra.mxu0 0.0
    %88 = vmatprep.subr.mxu0 0.0
    %89 = vmatpush1.msra.mxu0 0.0
    %90 = vmatprep.subr.mxu0 0.0
    %91 = vmatpush1.msra.mxu0 0.0
    %92 = vmatprep.subr.mxu0 0.0
    %93 = vmatpush1.msra.mxu0 0.0
    %94 = vmatprep.subr.mxu0 0.0
    %95 = vmatpush1.msra.mxu0 0.0
    %96 = vmatprep.subr.mxu0 0.0
    %97 = vmatpush1.msra.mxu0 0.0
    %98 = vmatprep.subr.mxu0 0.0
    %99 = vmatpush1.msra.mxu0 0.0
    %100 = vmatprep.subr.mxu0 0.0
    %101 = vmatpush1.msra.mxu0 0.0
    %102 = vmatprep.subr.mxu0 0.0
    %103 = vmatpush1.msra.mxu0 0.0
    %104 = vmatprep.subr.mxu0 0.0
    %105 = vmatpush1.msra.mxu0 0.0
    %106 = vmatprep.subr.mxu0 0.0
    %107 = vmatpush1.msra.mxu0 0.0
    %108 = vmatprep.subr.mxu0 0.0
    %109 = vmatpush1.msra.mxu0 0.0
    %110 = vmatprep.subr.mxu0 0.0
    %111 = vmatpush1.msra.mxu0 0.0
    %112 = vmatprep.subr.mxu0 0.0
    %113 = vmatpush1.msra.mxu0 0.0
    %114 = vmatprep.subr.mxu0 0.0
    %115 = vmatpush1.msra.mxu0 0.0
    %116 = vmatprep.subr.mxu0 0.0
    %117 = vmatpush1.msra.mxu0 0.0
    %118 = vmatprep.subr.mxu0 0.0
    %119 = vmatpush1.msra.mxu0 0.0
    %120 = vmatprep.subr.mxu0 0.0
    %121 = vmatpush1.msra.mxu0 0.0
    %122 = vmatprep.subr.mxu0 0.0
    %123 = vmatpush1.msra.mxu0 0.0
    %124 = vmatprep.subr.mxu0 0.0
    %125 = vmatpush1.msra.mxu0 0.0
    %126 = vmatprep.subr.mxu0 0.0
    %127 = vmatpush1.msra.mxu0 0.0
    %128 = vmatprep.subr.mxu0 0.0
    %129 = vmatpush1.msra.mxu0 0.0
    %130 = vmatprep.subr.mxu0 0.0
    %131 = vmatpush1.msra.mxu0 0.0
    %132 = vmatprep.subr.mxu0 0.0
    %133 = vmatpush1.msra.mxu0 0.0
    %134 = vmatprep.subr.mxu0 0.0
    %135 = vmatpush1.msra.mxu0 0.0
    %136 = vmatprep.subr.mxu0 0.0
    %137 = vmatpush1.msra.mxu0 0.0
    %138 = vmatprep.subr.mxu0 0.0
    %139 = vmatpush1.msra.mxu0 0.0
    %140 = vmatprep.subr.mxu0 0.0
    %141 = vmatpush1.msra.mxu0 0.0
    %142 = vmatprep.mubr.f32.mxu0 0.0
    %143 = vmatmul.mubr.f32.gmra.mrb[0].mxu0 %v67
    %v144 = vpop.f32.mrb[0].mxu0
    %v145 = vadd.f32 %v48, %v144
    %v146 = vpop.f32.mrb[0].mxu0
    %147 = vmatprep.mubr.f32.mxu0 0.0
    %148 = vmatmul.mubr.f32.gmra.mrb[0].mxu0 %v70
    %v149 = vpop.f32.mrb[0].mxu0
    %v150 = vadd.f32 %v53, %v149
    %v151 = vpop.f32.mrb[0].mxu0
    %152 = vmatprep.mubr.f32.mxu0 0.0
    %153 = vmatmul.mubr.f32.gmra.mrb[0].mxu0 %v73
    %v154 = vpop.f32.mrb[0].mxu0
    %v155 = vadd.f32 %v58, %v154
    %v156 = vpop.f32.mrb[0].mxu0
    %157 = vmatprep.mubr.f32.mxu0 0.0
    %158 = vmatmul.mubr.f32.gmra.mrb[0].mxu0 %v76
    %v159 = vpop.f32.mrb[0].mxu0
    %v160 = vadd.f32 %v63, %v159
    %v161 = vpop.f32.mrb[0].mxu0
    %162 = vdwg.mxu0
    %v163 = vmax.f32 %v145, 0.0
    %v164 = vmax.f32 %v150, 0.0
    %v165 = vmax.f32 %v155, 0.0
    %v166 = vmax.f32 %v160, 0.0
    %v167 = vld [vmem:[%s3] sm:$0xff]
    %v168 = vld [vmem:[%s3 + $0x8] sm:$0xff]
    %v169 = vld [vmem:[%s3 + $0x10] sm:$0xff]
    %v170 = vld [vmem:[%s3 + $0x18] sm:$0xff]
    %v171 = vld [vmem:[%s4] sm:$0xff]
    %v172 = vld [vmem:[%s4 + $0x8] sm:$0xff]
    %v173 = vld [vmem:[%s4 + $0x10] sm:$0xff]
    %v174 = vld [vmem:[%s4 + $0x18] sm:$0xff]
    %176 = vset.pattern.permute.xlu0 0
    %177 = vperm.xlu0 %176, %v171
    %v178 = vpop.permute.xlu0 %177
    %181 = vset.pattern.permute.xlu0 0
    %182 = vperm.xlu0 %181, %v172
    %v183 = vpop.permute.xlu0 %182
    %186 = vset.pattern.permute.xlu0 0
    %187 = vperm.xlu0 %186, %v173
    %v188 = vpop.permute.xlu0 %187
    %191 = vset.pattern.permute.xlu0 0
    %192 = vperm.xlu0 %191, %v174
    %v193 = vpop.permute.xlu0 %192
    %vm195 = vcmask 261120
    %v197 = vsel %vm195, %v167, 0
    %v200 = vsel %vm195, %v168, 0
    %v203 = vsel %vm195, %v169, 0
    %v206 = vsel %vm195, %v170, 0
    %208 = vmatprep.subr.mxu0 0.0
    %209 = vmatpush1.msra.mxu0 %v163
    %210 = vmatprep.subr.mxu0 0.0
    %211 = vmatpush1.msra.mxu0 %v164
    %212 = vmatprep.subr.mxu0 0.0
    %213 = vmatpush1.msra.mxu0 %v165
    %214 = vmatprep.subr.mxu0 0.0
    %215 = vmatpush1.msra.mxu0 %v166
    %216 = vmatprep.subr.mxu0 0.0
    %217 = vmatpush1.msra.mxu0 0.0
    %218 = vmatprep.subr.mxu0 0.0
    %219 = vmatpush1.msra.mxu0 0.0
    %220 = vmatprep.subr.mxu0 0.0
    %221 = vmatpush1.msra.mxu0 0.0
    %222 = vmatprep.subr.mxu0 0.0
    %223 = vmatpush1.msra.mxu0 0.0
    %224 = vmatprep.subr.mxu0 0.0
    %225 = vmatpush1.msra.mxu0 0.0
    %226 = vmatprep.subr.mxu0 0.0
    %227 = vmatpush1.msra.mxu0 0.0
    %228 = vmatprep.subr.mxu0 0.0
    %229 = vmatpush1.msra.mxu0 0.0
    %230 = vmatprep.subr.mxu0 0.0
    %231 = vmatpush1.msra.mxu0 0.0
    %232 = vmatprep.subr.mxu0 0.0
    %233 = vmatpush1.msra.mxu0 0.0
    %234 = vmatprep.subr.mxu0 0.0
    %235 = vmatpush1.msra.mxu0 0.0
    %236 = vmatprep.subr.mxu0 0.0
    %237 = vmatpush1.msra.mxu0 0.0
    %238 = vmatprep.subr.mxu0 0.0
    %239 = vmatpush1.msra.mxu0 0.0
    %240 = vmatprep.subr.mxu0 0.0
    %241 = vmatpush1.msra.mxu0 0.0
    %242 = vmatprep.subr.mxu0 0.0
    %243 = vmatpush1.msra.mxu0 0.0
    %244 = vmatprep.subr.mxu0 0.0
    %245 = vmatpush1.msra.mxu0 0.0
    %246 = vmatprep.subr.mxu0 0.0
    %247 = vmatpush1.msra.mxu0 0.0
    %248 = vmatprep.subr.mxu0 0.0
    %249 = vmatpush1.msra.mxu0 0.0
    %250 = vmatprep.subr.mxu0 0.0
    %251 = vmatpush1.msra.mxu0 0.0
    %252 = vmatprep.subr.mxu0 0.0
    %253 = vmatpush1.msra.mxu0 0.0
    %254 = vmatprep.subr.mxu0 0.0
    %255 = vmatpush1.msra.mxu0 0.0
    %256 = vmatprep.subr.mxu0 0.0
    %257 = vmatpush1.msra.mxu0 0.0
    %258 = vmatprep.subr.mxu0 0.0
    %259 = vmatpush1.msra.mxu0 0.0
    %260 = vmatprep.subr.mxu0 0.0
    %261 = vmatpush1.msra.mxu0 0.0
    %262 = vmatprep.subr.mxu0 0.0
    %263 = vmatpush1.msra.mxu0 0.0
    %264 = vmatprep.subr.mxu0 0.0
    %265 = vmatpush1.msra.mxu0 0.0
    %266 = vmatprep.subr.mxu0 0.0
    %267 = vmatpush1.msra.mxu0 0.0
    %268 = vmatprep.subr.mxu0 0.0
    %269 = vmatpush1.msra.mxu0 0.0
    %270 = vmatprep.subr.mxu0 0.0
    %271 = vmatpush1.msra.mxu0 0.0
    %272 = vmatprep.mubr.f32.mxu0 0.0
    %273 = vmatmul.mubr.f32.gmra.mrb[0].mxu0 %v197
    %v274 = vpop.f32.mrb[0].mxu0
    %v275 = vadd.f32 %v178, %v274
    %v276 = vpop.f32.mrb[0].mxu0
    %277 = vmatprep.mubr.f32.mxu0 0.0
    %278 = vmatmul.mubr.f32.gmra.mrb[0].mxu0 %v200
    %v279 = vpop.f32.mrb[0].mxu0
    %v280 = vadd.f32 %v183, %v279
    %v281 = vpop.f32.mrb[0].mxu0
    %282 = vmatprep.mubr.f32.mxu0 0.0
    %283 = vmatmul.mubr.f32.gmra.mrb[0].mxu0 %v203
    %v284 = vpop.f32.mrb[0].mxu0
    %v285 = vadd.f32 %v188, %v284
    %v286 = vpop.f32.mrb[0].mxu0
    %287 = vmatprep.mubr.f32.mxu0 0.0
    %288 = vmatmul.mubr.f32.gmra.mrb[0].mxu0 %v206
    %v289 = vpop.f32.mrb[0].mxu0
    %v290 = vadd.f32 %v193, %v289
    %v291 = vpop.f32.mrb[0].mxu0
    %292 = vdwg.mxu0
    %v293 = vmax.f32 %v275, 0.0
    %v294 = vmax.f32 %v280, 0.0
    %v295 = vmax.f32 %v285, 0.0
    %v296 = vmax.f32 %v290, 0.0
    %v297 = vld [vmem:[%s5] sm:$0xff]
    %v298 = vld [vmem:[%s5 + $0x8] sm:$0xff]
    %v299 = vld [vmem:[%s5 + $0x10] sm:$0xff]
    %v300 = vld [vmem:[%s5 + $0x18] sm:$0xff]
    %v301 = vld [vmem:[%s6] sm:$0xff]
    %v302 = vld [vmem:[%s6 + $0x8] sm:$0xff]
    %v303 = vld [vmem:[%s6 + $0x10] sm:$0xff]
    %v304 = vld [vmem:[%s6 + $0x18] sm:$0xff]
    %306 = vset.pattern.permute.xlu0 0
    %307 = vperm.xlu0 %306, %v301
    %v308 = vpop.permute.xlu0 %307
    %311 = vset.pattern.permute.xlu0 0
    %312 = vperm.xlu0 %311, %v302
    %v313 = vpop.permute.xlu0 %312
    %316 = vset.pattern.permute.xlu0 0
    %317 = vperm.xlu0 %316, %v303
    %v318 = vpop.permute.xlu0 %317
    %321 = vset.pattern.permute.xlu0 0
    %322 = vperm.xlu0 %321, %v304
    %v323 = vpop.permute.xlu0 %322
    %v326 = vsel %vm195, %v297, 0
    %v329 = vsel %vm195, %v298, 0
    %v332 = vsel %vm195, %v299, 0
    %v335 = vsel %vm195, %v300, 0
    %337 = vmatprep.subr.mxu0 0.0
    %338 = vmatpush1.msra.mxu0 %v293
    %339 = vmatprep.subr.mxu0 0.0
    %340 = vmatpush1.msra.mxu0 %v294
    %341 = vmatprep.subr.mxu0 0.0
    %342 = vmatpush1.msra.mxu0 %v295
    %343 = vmatprep.subr.mxu0 0.0
    %344 = vmatpush1.msra.mxu0 %v296
    %345 = vmatprep.subr.mxu0 0.0
    %346 = vmatpush1.msra.mxu0 0.0
    %347 = vmatprep.subr.mxu0 0.0
    %348 = vmatpush1.msra.mxu0 0.0
    %349 = vmatprep.subr.mxu0 0.0
    %350 = vmatpush1.msra.mxu0 0.0
    %351 = vmatprep.subr.mxu0 0.0
    %352 = vmatpush1.msra.mxu0 0.0
    %353 = vmatprep.subr.mxu0 0.0
    %354 = vmatpush1.msra.mxu0 0.0
    %355 = vmatprep.subr.mxu0 0.0
    %356 = vmatpush1.msra.mxu0 0.0
    %357 = vmatprep.subr.mxu0 0.0
    %358 = vmatpush1.msra.mxu0 0.0
    %359 = vmatprep.subr.mxu0 0.0
    %360 = vmatpush1.msra.mxu0 0.0
    %361 = vmatprep.subr.mxu0 0.0
    %362 = vmatpush1.msra.mxu0 0.0
    %363 = vmatprep.subr.mxu0 0.0
    %364 = vmatpush1.msra.mxu0 0.0
    %365 = vmatprep.subr.mxu0 0.0
    %366 = vmatpush1.msra.mxu0 0.0
    %367 = vmatprep.subr.mxu0 0.0
    %368 = vmatpush1.msra.mxu0 0.0
    %369 = vmatprep.subr.mxu0 0.0
    %370 = vmatpush1.msra.mxu0 0.0
    %371 = vmatprep.subr.mxu0 0.0
    %372 = vmatpush1.msra.mxu0 0.0
    %373 = vmatprep.subr.mxu0 0.0
    %374 = vmatpush1.msra.mxu0 0.0
    %375 = vmatprep.subr.mxu0 0.0
    %376 = vmatpush1.msra.mxu0 0.0
    %377 = vmatprep.subr.mxu0 0.0
    %378 = vmatpush1.msra.mxu0 0.0
    %379 = vmatprep.subr.mxu0 0.0
    %380 = vmatpush1.msra.mxu0 0.0
    %381 = vmatprep.subr.mxu0 0.0
    %382 = vmatpush1.msra.mxu0 0.0
    %383 = vmatprep.subr.mxu0 0.0
    %384 = vmatpush1.msra.mxu0 0.0
    %385 = vmatprep.subr.mxu0 0.0
    %386 = vmatpush1.msra.mxu0 0.0
    %387 = vmatprep.subr.mxu0 0.0
    %388 = vmatpush1.msra.mxu0 0.0
    %389 = vmatprep.subr.mxu0 0.0
    %390 = vmatpush1.msra.mxu0 0.0
    %391 = vmatprep.subr.mxu0 0.0
    %392 = vmatpush1.msra.mxu0 0.0
    %393 = vmatprep.subr.mxu0 0.0
    %394 = vmatpush1.msra.mxu0 0.0
    %395 = vmatprep.subr.mxu0 0.0
    %396 = vmatpush1.msra.mxu0 0.0
    %397 = vmatprep.subr.mxu0 0.0
    %398 = vmatpush1.msra.mxu0 0.0
    %399 = vmatprep.subr.mxu0 0.0
    %400 = vmatpush1.msra.mxu0 0.0
    %401 = vmatprep.mubr.f32.mxu0 0.0
    %402 = vmatmul.mubr.f32.gmra.mrb[0].mxu0 %v326
    %v403 = vpop.f32.mrb[0].mxu0
    %v404 = vadd.f32 %v308, %v403
    %v405 = vpop.f32.mrb[0].mxu0
    %406 = vmatprep.mubr.f32.mxu0 0.0
    %407 = vmatmul.mubr.f32.gmra.mrb[0].mxu0 %v329
    %v408 = vpop.f32.mrb[0].mxu0
    %v409 = vadd.f32 %v313, %v408
    %v410 = vpop.f32.mrb[0].mxu0
    %411 = vmatprep.mubr.f32.mxu0 0.0
    %412 = vmatmul.mubr.f32.gmra.mrb[0].mxu0 %v332
    %v413 = vpop.f32.mrb[0].mxu0
    %v414 = vadd.f32 %v318, %v413
    %v415 = vpop.f32.mrb[0].mxu0
    %416 = vmatprep.mubr.f32.mxu0 0.0
    %417 = vmatmul.mubr.f32.gmra.mrb[0].mxu0 %v335
    %v418 = vpop.f32.mrb[0].mxu0
    %v419 = vadd.f32 %v323, %v418
    %v420 = vpop.f32.mrb[0].mxu0
    %421 = vdwg.mxu0
    %v422 = vmax.f32 %v404, 0.0
    %v423 = vmax.f32 %v409, 0.0
    %v424 = vmax.f32 %v414, 0.0
    %v425 = vmax.f32 %v419, 0.0
    %v426 = vld [vmem:[%s7] sm:$0x1]
    %v427 = vld [vmem:[#allocation2] sm:$0x1]
    %429 = vset.pattern.permute.xlu0 0
    %430 = vperm.xlu0 %429, %v427
    %v431 = vpop.permute.xlu0 %430
    %v433 = vlaneseq
    %v434 = vshrl.u32 %v433, 7
    %v435 = vsub.s32 0, %v434
    %v436 = vrot.slane %v431, %v435
    %v438 = vsel %vm195, %v426, 0
    %440 = vmatprep.subr.mxu0 0.0
    %441 = vmatpush1.msra.mxu0 %v422
    %442 = vmatprep.subr.mxu0 0.0
    %443 = vmatpush1.msra.mxu0 %v423
    %444 = vmatprep.subr.mxu0 0.0
    %445 = vmatpush1.msra.mxu0 %v424
    %446 = vmatprep.subr.mxu0 0.0
    %447 = vmatpush1.msra.mxu0 %v425
    %448 = vmatprep.subr.mxu0 0.0
    %449 = vmatpush1.msra.mxu0 0.0
    %450 = vmatprep.subr.mxu0 0.0
    %451 = vmatpush1.msra.mxu0 0.0
    %452 = vmatprep.subr.mxu0 0.0
    %453 = vmatpush1.msra.mxu0 0.0
    %454 = vmatprep.subr.mxu0 0.0
    %455 = vmatpush1.msra.mxu0 0.0
    %456 = vmatprep.subr.mxu0 0.0
    %457 = vmatpush1.msra.mxu0 0.0
    %458 = vmatprep.subr.mxu0 0.0
    %459 = vmatpush1.msra.mxu0 0.0
    %460 = vmatprep.subr.mxu0 0.0
    %461 = vmatpush1.msra.mxu0 0.0
    %462 = vmatprep.subr.mxu0 0.0
    %463 = vmatpush1.msra.mxu0 0.0
    %464 = vmatprep.subr.mxu0 0.0
    %465 = vmatpush1.msra.mxu0 0.0
    %466 = vmatprep.subr.mxu0 0.0
    %467 = vmatpush1.msra.mxu0 0.0
    %468 = vmatprep.subr.mxu0 0.0
    %469 = vmatpush1.msra.mxu0 0.0
    %470 = vmatprep.subr.mxu0 0.0
    %471 = vmatpush1.msra.mxu0 0.0
    %472 = vmatprep.subr.mxu0 0.0
    %473 = vmatpush1.msra.mxu0 0.0
    %474 = vmatprep.subr.mxu0 0.0
    %475 = vmatpush1.msra.mxu0 0.0
    %476 = vmatprep.subr.mxu0 0.0
    %477 = vmatpush1.msra.mxu0 0.0
    %478 = vmatprep.subr.mxu0 0.0
    %479 = vmatpush1.msra.mxu0 0.0
    %480 = vmatprep.subr.mxu0 0.0
    %481 = vmatpush1.msra.mxu0 0.0
    %482 = vmatprep.subr.mxu0 0.0
    %483 = vmatpush1.msra.mxu0 0.0
    %484 = vmatprep.subr.mxu0 0.0
    %485 = vmatpush1.msra.mxu0 0.0
    %486 = vmatprep.subr.mxu0 0.0
    %487 = vmatpush1.msra.mxu0 0.0
    %488 = vmatprep.subr.mxu0 0.0
    %489 = vmatpush1.msra.mxu0 0.0
    %490 = vmatprep.subr.mxu0 0.0
    %491 = vmatpush1.msra.mxu0 0.0
    %492 = vmatprep.subr.mxu0 0.0
    %493 = vmatpush1.msra.mxu0 0.0
    %494 = vmatprep.subr.mxu0 0.0
    %495 = vmatpush1.msra.mxu0 0.0
    %496 = vmatprep.subr.mxu0 0.0
    %497 = vmatpush1.msra.mxu0 0.0
    %498 = vmatprep.subr.mxu0 0.0
    %499 = vmatpush1.msra.mxu0 0.0
    %500 = vmatprep.subr.mxu0 0.0
    %501 = vmatpush1.msra.mxu0 0.0
    %502 = vmatprep.subr.mxu0 0.0
    %503 = vmatpush1.msra.mxu0 0.0
    %504 = vmatprep.mubr.f32.mxu0 0.0
    %505 = vmatmul.mubr.f32.gmra.mrb[0].mxu0 %v438
    %v506 = vpop.f32.mrb[0].mxu0
    %v507 = vadd.f32 %v436, %v506
    %v508 = vpop.f32.mrb[0].mxu0
    %509 = vdwg.mxu0
    %510 = vst [vmem:[#allocation3] sm:$0x1] %v507
    // Predicated region
    $region38: #{tpu_custom_call.1} parent=1 // pred_check
      _
    $region39: #{tpu_custom_call.1} parent=1 // pred_check_branch
      %512 = sbr.rel (0) target = $region41
    $region40: #{tpu_custom_call.1} parent=1 // pred_region
      %s514 = ssub.s32 16, 16
      %515 = vsyncadd [#allocation4], %s514
      %s517 = sshll.u32 [#allocation3], 4
      %s518 = int_to_ptr.vmem [resolvable:$true] %s517
      %520 = dma.vmem_to_hbm [thread:$0]  %s518, 16, %s9, [#allocation4]
    $region41: #{tpu_custom_call.1} parent=1 // pred_fallthru
      _
    // Predicated region
    $region42: #{tpu_custom_call.1} parent=1 // pred_check
      _
    $region43: #{tpu_custom_call.1} parent=1 // pred_check_branch
      %522 = sbr.rel (0) target = $region45
    $region44: #{tpu_custom_call.1} parent=1 // pred_region
      %523 = dma.done [#allocation4], 16
    $region45: #{tpu_custom_call.1} parent=1 // pred_fallthru
      _
    %524 = vsyncpa [#allocation4], 1

</llo_original>
